<compile_context>
chip_gen: v7x
topology: tpu7x:2x2x1
jax: 0.10.0
libtpu: 0.0.40
codegen_flags: <defaults>
</compile_context>

<pallas_src>
import functools
import math

import jax
import jax.numpy as jnp
from jax.experimental import pallas as pl
from jax.experimental.pallas import tpu as pltpu


def qmix_kernel(q_ref, obs_ref, wcat_ref, bcat_ref, w2out_ref, b2b_ref,
                out_ref, *, num_agents, h_pad):
    obs = obs_ref[...]                                   # (TB, D)
    q = q_ref[...]                                       # (TB, A)

    # ---- single fused matmul for every obs-driven hyper layer ----------------
    # column layout: [agent_0 | ... | agent_{A-1} | b1 | w2 | b2_l1], each h_pad wide
    y = jnp.dot(obs, wcat_ref[...],
                preferred_element_type=jnp.float32) + bcat_ref[...]   # (TB, C)

    A = num_agents
    # ---- first mixing layer: elu(sum_a q_a * |w1_a| + b1) --------------------
    x = y[:, A * h_pad:(A + 1) * h_pad]                  # b1 chunk   (TB, Hp)
    for a in range(A):                                   # static, A is tiny
        x = x + q[:, a:a + 1] * jnp.abs(y[:, a * h_pad:(a + 1) * h_pad])
    # ELU (alpha=1).  exp(min(x,0))-1 keeps the unselected branch finite; the
    # precision loss vs expm1 near 0 is far below the 1e-5 test tolerance and
    # avoids relying on an expm1 lowering rule.
    x = jnp.where(x > 0.0, x, jnp.exp(jnp.minimum(x, 0.0)) - 1.0)    # (TB, Hp)

    # ---- second mixing layer folded into one lane reduction ------------------
    w2 = jnp.abs(y[:, (A + 1) * h_pad:(A + 2) * h_pad])              # (TB, Hp)
    h = jnp.maximum(y[:, (A + 2) * h_pad:(A + 3) * h_pad], 0.0)      # (TB, Hp)
    # out = sum(x*|w2|) + (relu(h) . W_b2l2 + b_b2l2); the H->1 matmul becomes an
    # elementwise multiply with a broadcast weight row fused into the reduction.
    contrib = x * w2 + h * w2out_ref[...]                             # (TB, Hp)
    out_ref[...] = (jnp.sum(contrib, axis=-1, keepdims=True)
                    + b2b_ref[0, 0])                                  # (TB, 1)


def qmix_forward(q_values, total_obs, params, *, block_b=512):
    B, A = q_values.shape
    D = total_obs.shape[1]
    h_pad = params["h_pad"]
    C = (A + 3) * h_pad

    tb = min(block_b, B)
    n_blk = -(-B // tb)
    b_pad = n_blk * tb
    if b_pad != B:                      # pad batch to a whole number of tiles
        q_values = jnp.pad(q_values, ((0, b_pad - B), (0, 0)))
        total_obs = jnp.pad(total_obs, ((0, b_pad - B), (0, 0)))

    kernel = functools.partial(qmix_kernel, num_agents=A, h_pad=h_pad)

    def resident(shape):                # weights: same block for every grid step
        return pl.BlockSpec(shape, lambda i: (0, 0))

    out = pl.pallas_call(
        kernel,
        out_shape=jax.ShapeDtypeStruct((b_pad, 1), jnp.float32),
        grid=(n_blk,),
        in_specs=[
            pl.BlockSpec((tb, A), lambda i: (i, 0)),            # q tile
            pl.BlockSpec((tb, D), lambda i: (i, 0)),            # obs tile
            resident((D, C)),                                    # fused weights
            resident((1, C)),                                    # packed biases
            resident((1, h_pad)),                                # hyper_b2_l2 weight row
            pl.BlockSpec(memory_space=pltpu.MemorySpace.SMEM),   # hyper_b2_l2 bias (scalar)
        ],
        out_specs=pl.BlockSpec((tb, 1), lambda i: (i, 0)),
        compiler_params=pltpu.CompilerParams(
            dimension_semantics=("parallel",)),
    )(q_values, total_obs, params["w_cat"], params["b_cat"],
      params["b2l2_w_row"], params["b2l2_b"])
    return out[:B, 0]   # torch: (B,1,1).squeeze() -> (B,)


# ------------------------------------------------------------------------------
# Deterministic parameter init (mirrors weights_init: xavier_uniform weights,
# zero biases), then fused/padded re-layout for the kernel.
# ------------------------------------------------------------------------------
def xavier_uniform(key, out_f, in_f):
    limit = math.sqrt(6.0 / (in_f + out_f))
    return jax.random.uniform(key, (out_f, in_f), jnp.float32, -limit, limit)


def init_params(key, num_agents, hidden_dim, total_obs_dim):
    A, H, D = num_agents, hidden_dim, total_obs_dim
    h_pad = ((H + 127) // 128) * 128          # pad every chunk to full 128-lane width
    C = (A + 3) * h_pad

    k = jax.random.split(key, 5)
    W_w1 = xavier_uniform(k[0], A * H, D)     # torch layout: (out, in)
    W_b1 = xavier_uniform(k[1], H, D)
    W_w2 = xavier_uniform(k[2], H, D)
    W_b2l1 = xavier_uniform(k[3], H, D)
    W_b2l2 = xavier_uniform(k[4], 1, H)
    # weights_init sets every Linear bias to zero (kept explicit so non-zero
    # biases would flow through both kernel and reference identically).
    b_w1 = jnp.zeros((A * H,), jnp.float32)
    b_b1 = jnp.zeros((H,), jnp.float32)
    b_w2 = jnp.zeros((H,), jnp.float32)
    b_b2l1 = jnp.zeros((H,), jnp.float32)
    b_b2l2 = jnp.zeros((1,), jnp.float32)

    torch_params = dict(W_w1=W_w1, b_w1=b_w1, W_b1=W_b1, b_b1=b_b1,
                        W_w2=W_w2, b_w2=b_w2, W_b2l1=W_b2l1, b_b2l1=b_b2l1,
                        W_b2l2=W_b2l2, b_b2l2=b_b2l2)

    # ---- fused kernel layout --------------------------------------------------
    # column order: [agent_0 | ... | agent_{A-1} | b1 | w2 | b2_l1],
    # each chunk zero-padded from H to h_pad lanes (zero weight AND zero bias in
    # the padding, so padded lanes stay exactly 0 through abs/ELU/relu).
    w_cat = jnp.zeros((D, C), jnp.float32)
    b_cat = jnp.zeros((1, C), jnp.float32)
    w1_t = W_w1.T                                         # (D, A*H)
    for a in range(A):
        w_cat = w_cat.at[:, a * h_pad:a * h_pad + H].set(w1_t[:, a * H:(a + 1) * H])
        b_cat = b_cat.at[0, a * h_pad:a * h_pad + H].set(b_w1[a * H:(a + 1) * H])
    for i, (w, b) in enumerate([(W_b1.T, b_b1), (W_w2.T, b_w2), (W_b2l1.T, b_b2l1)]):
        off = (A + i) * h_pad
        w_cat = w_cat.at[:, off:off + H].set(w)
        b_cat = b_cat.at[0, off:off + H].set(b)

    b2l2_w_row = jnp.zeros((1, h_pad), jnp.float32).at[0, :H].set(W_b2l2[0])
    b2l2_b = b_b2l2.reshape(1, 1)

    kern = dict(h_pad=h_pad, w_cat=w_cat, b_cat=b_cat,
                b2l2_w_row=b2l2_w_row, b2l2_b=b2l2_b)
    return torch_params, kern


def reference_forward(q_values, total_obs, tp, num_agents, hidden_dim):
    """Pure-JAX replica of the PyTorch forward for verification."""
    w1 = jnp.abs(total_obs @ tp["W_w1"].T + tp["b_w1"])
    w1 = w1.reshape(-1, num_agents, hidden_dim)
    b1 = (total_obs @ tp["W_b1"].T + tp["b_b1"]).reshape(-1, 1, hidden_dim)
    x = jax.nn.elu(jnp.einsum("ba,bah->bh", q_values, w1)[:, None, :] + b1)
    w2 = jnp.abs(total_obs @ tp["W_w2"].T + tp["b_w2"]).reshape(-1, hidden_dim, 1)
    h = jax.nn.relu(total_obs @ tp["W_b2l1"].T + tp["b_b2l1"])
    b2 = (h @ tp["W_b2l2"].T + tp["b_b2l2"]).reshape(-1, 1, 1)
    out = jnp.einsum("bqh,bho->bqo", x, w2) + b2
    return out.squeeze()


if __name__ == "__main__":
    B, A, H, D = 8, 4, 32, 64   # batch, num_agents, hidden_dim, total_obs_dim

    root = jax.random.PRNGKey(0)
    k_par, k_q, k_obs = jax.random.split(root, 3)
    torch_params, kern_params = init_params(k_par, A, H, D)

    q_values = jax.random.normal(k_q, (B, A), jnp.float32)
    total_obs = jax.random.normal(k_obs, (B, D), jnp.float32)

    out = qmix_forward(q_values, total_obs, kern_params)
    out = jax.block_until_ready(out)

    ref = reference_forward(q_values, total_obs, torch_params, A, H)
    assert out.shape == (B,)
    assert jnp.allclose(out, ref, atol=1e-5, rtol=1e-5), (out, ref)

    print("KERNEL_OK")
</pallas_src>

<mosaic_0001>
module attributes {stable_mosaic.version = 11 : i64} {
  func.func @qmix_kernel(%arg0: i32, %arg1: memref<8x4xf32, #tpu.memory_space<vmem>>, %arg2: memref<8x64xf32, #tpu.memory_space<vmem>>, %arg3: memref<64x896xf32, #tpu.memory_space<vmem>>, %arg4: memref<1x896xf32, #tpu.memory_space<vmem>>, %arg5: memref<1x128xf32, #tpu.memory_space<vmem>>, %arg6: memref<1x1xf32, #tpu.memory_space<smem>>, %arg7: memref<8x1xf32, #tpu.memory_space<vmem>>) attributes {dimension_semantics = [#tpu.dimension_semantics<parallel>], iteration_bounds = array<i64: 1>, scalar_prefetch = 0 : i64, scratch_operands = 0 : i64, tpu.core_type = #tpu.core_type<tc>, window_params = [{transform_indices = @transform_0, window_bounds = array<i64: 8, 4>}, {transform_indices = @transform_1, window_bounds = array<i64: 8, 64>}, {pipeline_mode = #tpu.pipeline_mode<synchronous>, transform_indices = @transform_2, window_bounds = array<i64: 64, 896>}, {pipeline_mode = #tpu.pipeline_mode<synchronous>, transform_indices = @transform_3, window_bounds = array<i64: 1, 896>}, {pipeline_mode = #tpu.pipeline_mode<synchronous>, transform_indices = @transform_4, window_bounds = array<i64: 1, 128>}, {transform_indices = @transform_5, window_bounds = array<i64: 1, 1>}, {transform_indices = @transform_6, window_bounds = array<i64: 8, 1>}]} {
    %c0 = arith.constant 0 : index
    %c0_0 = arith.constant 0 : index
    %0 = vector.load %arg2[%c0, %c0_0] : memref<8x64xf32, #tpu.memory_space<vmem>>, vector<8x64xf32>
    %c0_1 = arith.constant 0 : index
    %c0_2 = arith.constant 0 : index
    %1 = vector.load %arg1[%c0_1, %c0_2] : memref<8x4xf32, #tpu.memory_space<vmem>>, vector<8x4xf32>
    %c0_3 = arith.constant 0 : index
    %c0_4 = arith.constant 0 : index
    %2 = vector.load %arg3[%c0_3, %c0_4] : memref<64x896xf32, #tpu.memory_space<vmem>>, vector<64x896xf32>
    %cst = arith.constant dense<0.000000e+00> : vector<8x896xf32>
    %3 = tpu.matmul %0, %2, %cst {dimension_numbers = #tpu.dot_dimension_numbers<[1], [0], [0], [1], [0, 0, 1, 1], [], []>} : vector<8x64xf32>, vector<64x896xf32>, vector<8x896xf32> -> vector<8x896xf32>
    %c0_5 = arith.constant 0 : index
    %c0_6 = arith.constant 0 : index
    %4 = vector.load %arg4[%c0_5, %c0_6] : memref<1x896xf32, #tpu.memory_space<vmem>>, vector<1x896xf32>
    %5 = vector.broadcast %4 : vector<1x896xf32> to vector<8x896xf32>
    %6 = arith.addf %3, %5 : vector<8x896xf32>
    %7 = vector.extract_strided_slice %6 {offsets = [0, 512], sizes = [8, 128], strides = [1, 1]} : vector<8x896xf32> to vector<8x128xf32>
    %8 = vector.extract_strided_slice %1 {offsets = [0, 0], sizes = [8, 1], strides = [1, 1]} : vector<8x4xf32> to vector<8x1xf32>
    %9 = vector.extract_strided_slice %6 {offsets = [0, 0], sizes = [8, 128], strides = [1, 1]} : vector<8x896xf32> to vector<8x128xf32>
    %10 = math.absf %9 : vector<8x128xf32>
    %11 = vector.broadcast %8 : vector<8x1xf32> to vector<8x128xf32>
    %12 = arith.mulf %11, %10 : vector<8x128xf32>
    %13 = arith.addf %7, %12 : vector<8x128xf32>
    %14 = vector.extract_strided_slice %1 {offsets = [0, 1], sizes = [8, 1], strides = [1, 1]} : vector<8x4xf32> to vector<8x1xf32>
    %15 = vector.extract_strided_slice %6 {offsets = [0, 128], sizes = [8, 128], strides = [1, 1]} : vector<8x896xf32> to vector<8x128xf32>
    %16 = math.absf %15 : vector<8x128xf32>
    %17 = vector.broadcast %14 : vector<8x1xf32> to vector<8x128xf32>
    %18 = arith.mulf %17, %16 : vector<8x128xf32>
    %19 = arith.addf %13, %18 : vector<8x128xf32>
    %20 = vector.extract_strided_slice %1 {offsets = [0, 2], sizes = [8, 1], strides = [1, 1]} : vector<8x4xf32> to vector<8x1xf32>
    %21 = vector.extract_strided_slice %6 {offsets = [0, 256], sizes = [8, 128], strides = [1, 1]} : vector<8x896xf32> to vector<8x128xf32>
    %22 = math.absf %21 : vector<8x128xf32>
    %23 = vector.broadcast %20 : vector<8x1xf32> to vector<8x128xf32>
    %24 = arith.mulf %23, %22 : vector<8x128xf32>
    %25 = arith.addf %19, %24 : vector<8x128xf32>
    %26 = vector.extract_strided_slice %1 {offsets = [0, 3], sizes = [8, 1], strides = [1, 1]} : vector<8x4xf32> to vector<8x1xf32>
    %27 = vector.extract_strided_slice %6 {offsets = [0, 384], sizes = [8, 128], strides = [1, 1]} : vector<8x896xf32> to vector<8x128xf32>
    %28 = math.absf %27 : vector<8x128xf32>
    %29 = vector.broadcast %26 : vector<8x1xf32> to vector<8x128xf32>
    %30 = arith.mulf %29, %28 : vector<8x128xf32>
    %31 = arith.addf %25, %30 : vector<8x128xf32>
    %cst_7 = arith.constant 0.000000e+00 : f32
    %32 = vector.broadcast %cst_7 : f32 to vector<8x128xf32>
    %33 = arith.cmpf ogt, %31, %32 : vector<8x128xf32>
    %cst_8 = arith.constant 0.000000e+00 : f32
    %34 = vector.broadcast %cst_8 : f32 to vector<8x128xf32>
    %35 = arith.minimumf %31, %34 : vector<8x128xf32>
    %36 = math.exp %35 : vector<8x128xf32>
    %cst_9 = arith.constant 1.000000e+00 : f32
    %37 = vector.broadcast %cst_9 : f32 to vector<8x128xf32>
    %38 = arith.subf %36, %37 : vector<8x128xf32>
    %39 = arith.select %33, %31, %38 : vector<8x128xi1>, vector<8x128xf32>
    %40 = vector.extract_strided_slice %6 {offsets = [0, 640], sizes = [8, 128], strides = [1, 1]} : vector<8x896xf32> to vector<8x128xf32>
    %41 = math.absf %40 : vector<8x128xf32>
    %42 = vector.extract_strided_slice %6 {offsets = [0, 768], sizes = [8, 128], strides = [1, 1]} : vector<8x896xf32> to vector<8x128xf32>
    %cst_10 = arith.constant 0.000000e+00 : f32
    %43 = vector.broadcast %cst_10 : f32 to vector<8x128xf32>
    %44 = arith.maximumf %42, %43 : vector<8x128xf32>
    %45 = arith.mulf %39, %41 : vector<8x128xf32>
    %c0_11 = arith.constant 0 : index
    %c0_12 = arith.constant 0 : index
    %46 = vector.load %arg5[%c0_11, %c0_12] : memref<1x128xf32, #tpu.memory_space<vmem>>, vector<1x128xf32>
    %47 = vector.broadcast %46 : vector<1x128xf32> to vector<8x128xf32>
    %48 = arith.mulf %44, %47 : vector<8x128xf32>
    %49 = arith.addf %45, %48 : vector<8x128xf32>
    %cst_13 = arith.constant dense<0.000000e+00> : vector<8xf32>
    %50 = vector.multi_reduction <add>, %49, %cst_13 [1] : vector<8x128xf32> to vector<8xf32>
    %51 = vector.shape_cast %50 : vector<8xf32> to vector<8x1xf32>
    %c0_14 = arith.constant 0 : index
    %c0_15 = arith.constant 0 : index
    %52 = memref.load %arg6[%c0_14, %c0_15] : memref<1x1xf32, #tpu.memory_space<smem>>
    %53 = vector.broadcast %52 : f32 to vector<8x1xf32>
    %54 = arith.addf %51, %53 : vector<8x1xf32>
    %c0_16 = arith.constant 0 : index
    %c0_17 = arith.constant 0 : index
    %55 = vector.load %arg7[%c0_16, %c0_17] : memref<8x1xf32, #tpu.memory_space<vmem>>, vector<8x1xf32>
    tpu.vector_store %arg7[%c0_16, %c0_17], %54 {strides = array<i32>} : memref<8x1xf32, #tpu.memory_space<vmem>>, vector<8x1xf32>,
    return
  }
  func.func @transform_0(%arg0: i32) -> (i32, i32) {
    %c0_i32 = arith.constant 0 : i32
    %c0_i32_0 = arith.constant 0 : i32
    return %arg0, %c0_i32 : i32, i32
  }
  func.func @transform_1(%arg0: i32) -> (i32, i32) {
    %c0_i32 = arith.constant 0 : i32
    %c0_i32_0 = arith.constant 0 : i32
    return %arg0, %c0_i32 : i32, i32
  }
  func.func @transform_2(%arg0: i32) -> (i32, i32) {
    %c0_i32 = arith.constant 0 : i32
    %c0_i32_0 = arith.constant 0 : i32
    %c0_i32_1 = arith.constant 0 : i32
    return %c0_i32, %c0_i32_0 : i32, i32
  }
  func.func @transform_3(%arg0: i32) -> (i32, i32) {
    %c0_i32 = arith.constant 0 : i32
    %c0_i32_0 = arith.constant 0 : i32
    %c0_i32_1 = arith.constant 0 : i32
    return %c0_i32, %c0_i32_0 : i32, i32
  }
  func.func @transform_4(%arg0: i32) -> (i32, i32) {
    %c0_i32 = arith.constant 0 : i32
    %c0_i32_0 = arith.constant 0 : i32
    %c0_i32_1 = arith.constant 0 : i32
    return %c0_i32, %c0_i32_0 : i32, i32
  }
  func.func @transform_5(%arg0: i32) -> (i32, i32) {
    %c0_i32 = arith.constant 0 : i32
    %c0_i32_0 = arith.constant 0 : i32
    %c0_i32_1 = arith.constant 0 : i32
    return %c0_i32, %c0_i32_0 : i32, i32
  }
  func.func @transform_6(%arg0: i32) -> (i32, i32) {
    %c0_i32 = arith.constant 0 : i32
    %c0_i32_0 = arith.constant 0 : i32
    return %arg0, %c0_i32 : i32, i32
  }
}

</mosaic_0001>

<llo_original>
// kernel: tpu_custom_call.1
$region0: #{tpu_custom_call.1}
  #allocation0 [shape = 'u32[]', space=smem, size = 0x4, offset = 0x4, fixed_abs, tag = 'smem constant byte address 0x4 - core index']
  #allocation1 [shape = 'u32[144,128]{1,0:T(1,128)}', space=vmem, size = 0x12000, scoped, tag = 'internal scratch']
  #allocation2 [shape = 'f32[1,1]{1,0:T(1,128)S(6)}', space=smem, size = 0x200, scoped, tag = 'scoped memory for tpu_custom_call.1']
  %s0 = inlined_call_operand.vmem [shape: f32[8,4], index: 0, kind: input, shape index: {}]
  %s1 = inlined_call_operand.vmem [shape: f32[8,64], index: 1, kind: input, shape index: {}]
  %s2 = inlined_call_operand.hbm [shape: f32[64,896], index: 2, kind: input, shape index: {}]
  %s3 = inlined_call_operand.vmem [shape: f32[1,896], index: 3, kind: input, shape index: {}]
  %s4 = inlined_call_operand.vmem [shape: f32[1,128], index: 4, kind: input, shape index: {}]
  %s5 = inlined_call_operand.<no memory space> [shape: f32[1,1], index: 5, kind: input, shape index: {}]
  %s6 = inlined_call_operand.vmem [shape: f32[8,1], index: 6, kind: output, shape index: {}]
  %s7 = sld [smem:[#allocation0]]
  $region38: #{tpu_custom_call.1} parent=0
    _
  %s9 = ssub.s32 1, %s7
  %s10 = scalar_select 0, %s9, %s7
  %11 = sst [smem:[#allocation2]] %s5
  $region1: #{tpu_custom_call.1} parent=0
    #allocation3 [shape = 'u8[229376]{0}', space=vmem, size = 0x38000, scoped, tag = 'input window, operand 2, single buffered']
    #allocation4 [shape = 's32[1]{0}', space=sflag, size = 0x4, scoped, tag = 'scoped memory for tpu_custom_call.1']
    %12 = vsyncpa [#allocation4], 0
    // Predicated region
    $region2: #{tpu_custom_call.1} parent=1 // pred_check
      _
    $region3: #{tpu_custom_call.1} parent=1 // pred_check_branch
      %14 = sbr.rel (0) target = $region5
    $region4: #{tpu_custom_call.1} parent=1 // pred_region
      _
    $region5: #{tpu_custom_call.1} parent=1 // pred_fallthru
      _
    // Predicated region
    $region6: #{tpu_custom_call.1} parent=1 // pred_check
      _
    $region7: #{tpu_custom_call.1} parent=1 // pred_check_branch
      %16 = sbr.rel (0) target = $region9
    $region8: #{tpu_custom_call.1} parent=1 // pred_region
      _
    $region9: #{tpu_custom_call.1} parent=1 // pred_fallthru
      _
    // Predicated region
    $region10: #{tpu_custom_call.1} parent=1 // pred_check
      _
    $region11: #{tpu_custom_call.1} parent=1 // pred_check_branch
      %18 = sbr.rel (0) target = $region13
    $region12: #{tpu_custom_call.1} parent=1 // pred_region
      %s20 = ssub.s32 7168, 7168
      %21 = vsyncadd [#allocation4], %s20
      %s22 = sshll.u32 [#allocation3], 4
      %s23 = int_to_ptr.vmem [resolvable:$true] %s22
      %28 = dma.hbm_to_vmem [thread:$0]  %s2, 7168, %s23, [#allocation4], 896, 896, 56
    $region13: #{tpu_custom_call.1} parent=1 // pred_fallthru
      _
    // Predicated region
    $region14: #{tpu_custom_call.1} parent=1 // pred_check
      _
    $region15: #{tpu_custom_call.1} parent=1 // pred_check_branch
      %30 = sbr.rel (0) target = $region17
    $region16: #{tpu_custom_call.1} parent=1 // pred_region
      _
    $region17: #{tpu_custom_call.1} parent=1 // pred_fallthru
      _
    // Predicated region
    $region18: #{tpu_custom_call.1} parent=1 // pred_check
      _
    $region19: #{tpu_custom_call.1} parent=1 // pred_check_branch
      %32 = sbr.rel (0) target = $region21
    $region20: #{tpu_custom_call.1} parent=1 // pred_region
      _
    $region21: #{tpu_custom_call.1} parent=1 // pred_fallthru
      _
    // Predicated region
    $region22: #{tpu_custom_call.1} parent=1 // pred_check
      _
    $region23: #{tpu_custom_call.1} parent=1 // pred_check_branch
      %34 = sbr.rel (0) target = $region25
    $region24: #{tpu_custom_call.1} parent=1 // pred_region
      _
    $region25: #{tpu_custom_call.1} parent=1 // pred_fallthru
      _
    // Predicated region
    $region26: #{tpu_custom_call.1} parent=1 // pred_check
      _
    $region27: #{tpu_custom_call.1} parent=1 // pred_check_branch
      %36 = sbr.rel (0) target = $region29
    $region28: #{tpu_custom_call.1} parent=1 // pred_region
      %37 = dma.done [#allocation4], 7168
    $region29: #{tpu_custom_call.1} parent=1 // pred_fallthru
      _
    %v38 = vld [vmem:[%s1] sm:$0xff]
    %v39 = vld [vmem:[%s0] sm:$0xff]
    %v40 = vld [vmem:[#allocation3] sm:$0xff]
    %v41 = vld [vmem:[#allocation3 + $0x8] sm:$0xff]
    %v42 = vld [vmem:[#allocation3 + $0x10] sm:$0xff]
    %v43 = vld [vmem:[#allocation3 + $0x18] sm:$0xff]
    %v44 = vld [vmem:[#allocation3 + $0x20] sm:$0xff]
    %v45 = vld [vmem:[#allocation3 + $0x28] sm:$0xff]
    %v46 = vld [vmem:[#allocation3 + $0x30] sm:$0xff]
    %v47 = vld [vmem:[#allocation3 + $0x38] sm:$0xff]
    %v48 = vld [vmem:[#allocation3 + $0x40] sm:$0xff]
    %v49 = vld [vmem:[#allocation3 + $0x48] sm:$0xff]
    %v50 = vld [vmem:[#allocation3 + $0x50] sm:$0xff]
    %v51 = vld [vmem:[#allocation3 + $0x58] sm:$0xff]
    %v52 = vld [vmem:[#allocation3 + $0x60] sm:$0xff]
    %v53 = vld [vmem:[#allocation3 + $0x68] sm:$0xff]
    %v54 = vld [vmem:[#allocation3 + $0x70] sm:$0xff]
    %v55 = vld [vmem:[#allocation3 + $0x78] sm:$0xff]
    %v56 = vld [vmem:[#allocation3 + $0x80] sm:$0xff]
    %v57 = vld [vmem:[#allocation3 + $0x88] sm:$0xff]
    %v58 = vld [vmem:[#allocation3 + $0x90] sm:$0xff]
    %v59 = vld [vmem:[#allocation3 + $0x98] sm:$0xff]
    %v60 = vld [vmem:[#allocation3 + $0xa0] sm:$0xff]
    %v61 = vld [vmem:[#allocation3 + $0xa8] sm:$0xff]
    %v62 = vld [vmem:[#allocation3 + $0xb0] sm:$0xff]
    %v63 = vld [vmem:[#allocation3 + $0xb8] sm:$0xff]
    %v64 = vld [vmem:[#allocation3 + $0xc0] sm:$0xff]
    %v65 = vld [vmem:[#allocation3 + $0xc8] sm:$0xff]
    %v66 = vld [vmem:[#allocation3 + $0xd0] sm:$0xff]
    %v67 = vld [vmem:[#allocation3 + $0xd8] sm:$0xff]
    %v68 = vld [vmem:[#allocation3 + $0xe0] sm:$0xff]
    %v69 = vld [vmem:[#allocation3 + $0xe8] sm:$0xff]
    %v70 = vld [vmem:[#allocation3 + $0xf0] sm:$0xff]
    %v71 = vld [vmem:[#allocation3 + $0xf8] sm:$0xff]
    %v72 = vld [vmem:[#allocation3 + $0x100] sm:$0xff]
    %v73 = vld [vmem:[#allocation3 + $0x108] sm:$0xff]
    %v74 = vld [vmem:[#allocation3 + $0x110] sm:$0xff]
    %v75 = vld [vmem:[#allocation3 + $0x118] sm:$0xff]
    %v76 = vld [vmem:[#allocation3 + $0x120] sm:$0xff]
    %v77 = vld [vmem:[#allocation3 + $0x128] sm:$0xff]
    %v78 = vld [vmem:[#allocation3 + $0x130] sm:$0xff]
    %v79 = vld [vmem:[#allocation3 + $0x138] sm:$0xff]
    %v80 = vld [vmem:[#allocation3 + $0x140] sm:$0xff]
    %v81 = vld [vmem:[#allocation3 + $0x148] sm:$0xff]
    %v82 = vld [vmem:[#allocation3 + $0x150] sm:$0xff]
    %v83 = vld [vmem:[#allocation3 + $0x158] sm:$0xff]
    %v84 = vld [vmem:[#allocation3 + $0x160] sm:$0xff]
    %v85 = vld [vmem:[#allocation3 + $0x168] sm:$0xff]
    %v86 = vld [vmem:[#allocation3 + $0x170] sm:$0xff]
    %v87 = vld [vmem:[#allocation3 + $0x178] sm:$0xff]
    %v88 = vld [vmem:[#allocation3 + $0x180] sm:$0xff]
    %v89 = vld [vmem:[#allocation3 + $0x188] sm:$0xff]
    %v90 = vld [vmem:[#allocation3 + $0x190] sm:$0xff]
    %v91 = vld [vmem:[#allocation3 + $0x198] sm:$0xff]
    %v92 = vld [vmem:[#allocation3 + $0x1a0] sm:$0xff]
    %v93 = vld [vmem:[#allocation3 + $0x1a8] sm:$0xff]
    %v94 = vld [vmem:[#allocation3 + $0x1b0] sm:$0xff]
    %v95 = vld [vmem:[#allocation3 + $0x1b8] sm:$0xff]
    %v96 = vld [vmem:[%s3] sm:$0xff]
    %v98 = vlaneseq
    %v99 = vshrl.u32 %v98, 7
    %v100 = vsub.s32 0, %v99
    %v101 = vrot.slane %v96, %v100
    %v102 = vlaneseq
    %v103 = vshrl.u32 %v102, 7
    %v104 = vsub.s32 1, %v103
    %v105 = vrot.slane %v96, %v104
    %v106 = vlaneseq
    %v107 = vshrl.u32 %v106, 7
    %v108 = vsub.s32 2, %v107
    %v109 = vrot.slane %v96, %v108
    %v110 = vlaneseq
    %v111 = vshrl.u32 %v110, 7
    %v112 = vsub.s32 3, %v111
    %v113 = vrot.slane %v96, %v112
    %v114 = vlaneseq
    %v115 = vshrl.u32 %v114, 7
    %v116 = vsub.s32 4, %v115
    %v117 = vrot.slane %v96, %v116
    %v118 = vlaneseq
    %v119 = vshrl.u32 %v118, 7
    %v120 = vsub.s32 5, %v119
    %v121 = vrot.slane %v96, %v120
    %v122 = vlaneseq
    %v123 = vshrl.u32 %v122, 7
    %v124 = vsub.s32 6, %v123
    %v125 = vrot.slane %v96, %v124
    %vm133 = vcmask 523264
    %v135 = vsel %vm133, %v38, 0
    %137 = vmatprep.subr.mxu0 %v41
    %138 = vmatpush1.msra.mxu0 %v40
    %139 = vmatprep.subr.mxu0 %v48
    %140 = vmatpush1.msra.mxu0 %v47
    %141 = vmatprep.subr.mxu0 %v55
    %142 = vmatpush1.msra.mxu0 %v54
    %143 = vmatprep.subr.mxu0 %v62
    %144 = vmatpush1.msra.mxu0 %v61
    %145 = vmatprep.subr.mxu0 %v69
    %146 = vmatpush1.msra.mxu0 %v68
    %147 = vmatprep.subr.mxu0 %v76
    %148 = vmatpush1.msra.mxu0 %v75
    %149 = vmatprep.subr.mxu0 %v83
    %150 = vmatpush1.msra.mxu0 %v82
    %151 = vmatprep.subr.mxu0 %v90
    %152 = vmatpush1.msra.mxu0 %v89
    %153 = vmatprep.subr.mxu0 0.0
    %154 = vmatpush1.msra.mxu0 0.0
    %155 = vmatprep.subr.mxu0 0.0
    %156 = vmatpush1.msra.mxu0 0.0
    %157 = vmatprep.subr.mxu0 0.0
    %158 = vmatpush1.msra.mxu0 0.0
    %159 = vmatprep.subr.mxu0 0.0
    %160 = vmatpush1.msra.mxu0 0.0
    %161 = vmatprep.subr.mxu0 0.0
    %162 = vmatpush1.msra.mxu0 0.0
    %163 = vmatprep.subr.mxu0 0.0
    %164 = vmatpush1.msra.mxu0 0.0
    %165 = vmatprep.subr.mxu0 0.0
    %166 = vmatpush1.msra.mxu0 0.0
    %167 = vmatprep.subr.mxu0 0.0
    %168 = vmatpush1.msra.mxu0 0.0
    %169 = vmatprep.subr.mxu0 0.0
    %170 = vmatpush1.msra.mxu0 0.0
    %171 = vmatprep.subr.mxu0 0.0
    %172 = vmatpush1.msra.mxu0 0.0
    %173 = vmatprep.subr.mxu0 0.0
    %174 = vmatpush1.msra.mxu0 0.0
    %175 = vmatprep.subr.mxu0 0.0
    %176 = vmatpush1.msra.mxu0 0.0
    %177 = vmatprep.subr.mxu0 0.0
    %178 = vmatpush1.msra.mxu0 0.0
    %179 = vmatprep.subr.mxu0 0.0
    %180 = vmatpush1.msra.mxu0 0.0
    %181 = vmatprep.subr.mxu0 0.0
    %182 = vmatpush1.msra.mxu0 0.0
    %183 = vmatprep.subr.mxu0 0.0
    %184 = vmatpush1.msra.mxu0 0.0
    %185 = vmatprep.subr.mxu0 0.0
    %186 = vmatpush1.msra.mxu0 0.0
    %187 = vmatprep.subr.mxu0 0.0
    %188 = vmatpush1.msra.mxu0 0.0
    %189 = vmatprep.subr.mxu0 0.0
    %190 = vmatpush1.msra.mxu0 0.0
    %191 = vmatprep.subr.mxu0 0.0
    %192 = vmatpush1.msra.mxu0 0.0
    %193 = vmatprep.subr.mxu0 0.0
    %194 = vmatpush1.msra.mxu0 0.0
    %195 = vmatprep.subr.mxu0 0.0
    %196 = vmatpush1.msra.mxu0 0.0
    %197 = vmatprep.subr.mxu0 0.0
    %198 = vmatpush1.msra.mxu0 0.0
    %199 = vmatprep.subr.mxu0 0.0
    %200 = vmatpush1.msra.mxu0 0.0
    %201 = vmatprep.mubr.f32.mxu0 0.0
    %202 = vmatmul.mubr.f32.gmra.mrb[0].mxu0 %v135
    %v203 = vpop.f32.mrb[0].mxu0
    %v204 = vadd.f32 %v101, %v203
    %v205 = vpop.f32.mrb[0].mxu0
    %v206 = vadd.f32 %v105, %v205
    %207 = vdwg.mxu0
    %208 = vmatprep.subr.mxu0 %v43
    %209 = vmatpush1.msra.mxu0 %v42
    %210 = vmatprep.subr.mxu0 %v50
    %211 = vmatpush1.msra.mxu0 %v49
    %212 = vmatprep.subr.mxu0 %v57
    %213 = vmatpush1.msra.mxu0 %v56
    %214 = vmatprep.subr.mxu0 %v64
    %215 = vmatpush1.msra.mxu0 %v63
    %216 = vmatprep.subr.mxu0 %v71
    %217 = vmatpush1.msra.mxu0 %v70
    %218 = vmatprep.subr.mxu0 %v78
    %219 = vmatpush1.msra.mxu0 %v77
    %220 = vmatprep.subr.mxu0 %v85
    %221 = vmatpush1.msra.mxu0 %v84
    %222 = vmatprep.subr.mxu0 %v92
    %223 = vmatpush1.msra.mxu0 %v91
    %224 = vmatprep.subr.mxu0 0.0
    %225 = vmatpush1.msra.mxu0 0.0
    %226 = vmatprep.subr.mxu0 0.0
    %227 = vmatpush1.msra.mxu0 0.0
    %228 = vmatprep.subr.mxu0 0.0
    %229 = vmatpush1.msra.mxu0 0.0
    %230 = vmatprep.subr.mxu0 0.0
    %231 = vmatpush1.msra.mxu0 0.0
    %232 = vmatprep.subr.mxu0 0.0
    %233 = vmatpush1.msra.mxu0 0.0
    %234 = vmatprep.subr.mxu0 0.0
    %235 = vmatpush1.msra.mxu0 0.0
    %236 = vmatprep.subr.mxu0 0.0
    %237 = vmatpush1.msra.mxu0 0.0
    %238 = vmatprep.subr.mxu0 0.0
    %239 = vmatpush1.msra.mxu0 0.0
    %240 = vmatprep.subr.mxu0 0.0
    %241 = vmatpush1.msra.mxu0 0.0
    %242 = vmatprep.subr.mxu0 0.0
    %243 = vmatpush1.msra.mxu0 0.0
    %244 = vmatprep.subr.mxu0 0.0
    %245 = vmatpush1.msra.mxu0 0.0
    %246 = vmatprep.subr.mxu0 0.0
    %247 = vmatpush1.msra.mxu0 0.0
    %248 = vmatprep.subr.mxu0 0.0
    %249 = vmatpush1.msra.mxu0 0.0
    %250 = vmatprep.subr.mxu0 0.0
    %251 = vmatpush1.msra.mxu0 0.0
    %252 = vmatprep.subr.mxu0 0.0
    %253 = vmatpush1.msra.mxu0 0.0
    %254 = vmatprep.subr.mxu0 0.0
    %255 = vmatpush1.msra.mxu0 0.0
    %256 = vmatprep.subr.mxu0 0.0
    %257 = vmatpush1.msra.mxu0 0.0
    %258 = vmatprep.subr.mxu0 0.0
    %259 = vmatpush1.msra.mxu0 0.0
    %260 = vmatprep.subr.mxu0 0.0
    %261 = vmatpush1.msra.mxu0 0.0
    %262 = vmatprep.subr.mxu0 0.0
    %263 = vmatpush1.msra.mxu0 0.0
    %264 = vmatprep.subr.mxu0 0.0
    %265 = vmatpush1.msra.mxu0 0.0
    %266 = vmatprep.subr.mxu0 0.0
    %267 = vmatpush1.msra.mxu0 0.0
    %268 = vmatprep.subr.mxu0 0.0
    %269 = vmatpush1.msra.mxu0 0.0
    %270 = vmatprep.subr.mxu0 0.0
    %271 = vmatpush1.msra.mxu0 0.0
    %272 = vmatprep.mubr.f32.mxu0 0.0
    %273 = vmatmul.mubr.f32.gmra.mrb[0].mxu0 %v135
    %v274 = vpop.f32.mrb[0].mxu0
    %v275 = vadd.f32 %v109, %v274
    %v276 = vpop.f32.mrb[0].mxu0
    %v277 = vadd.f32 %v113, %v276
    %278 = vdwg.mxu0
    %279 = vmatprep.subr.mxu0 %v45
    %280 = vmatpush1.msra.mxu0 %v44
    %281 = vmatprep.subr.mxu0 %v52
    %282 = vmatpush1.msra.mxu0 %v51
    %283 = vmatprep.subr.mxu0 %v59
    %284 = vmatpush1.msra.mxu0 %v58
    %285 = vmatprep.subr.mxu0 %v66
    %286 = vmatpush1.msra.mxu0 %v65
    %287 = vmatprep.subr.mxu0 %v73
    %288 = vmatpush1.msra.mxu0 %v72
    %289 = vmatprep.subr.mxu0 %v80
    %290 = vmatpush1.msra.mxu0 %v79
    %291 = vmatprep.subr.mxu0 %v87
    %292 = vmatpush1.msra.mxu0 %v86
    %293 = vmatprep.subr.mxu0 %v94
    %294 = vmatpush1.msra.mxu0 %v93
    %295 = vmatprep.subr.mxu0 0.0
    %296 = vmatpush1.msra.mxu0 0.0
    %297 = vmatprep.subr.mxu0 0.0
    %298 = vmatpush1.msra.mxu0 0.0
    %299 = vmatprep.subr.mxu0 0.0
    %300 = vmatpush1.msra.mxu0 0.0
    %301 = vmatprep.subr.mxu0 0.0
    %302 = vmatpush1.msra.mxu0 0.0
    %303 = vmatprep.subr.mxu0 0.0
    %304 = vmatpush1.msra.mxu0 0.0
    %305 = vmatprep.subr.mxu0 0.0
    %306 = vmatpush1.msra.mxu0 0.0
    %307 = vmatprep.subr.mxu0 0.0
    %308 = vmatpush1.msra.mxu0 0.0
    %309 = vmatprep.subr.mxu0 0.0
    %310 = vmatpush1.msra.mxu0 0.0
    %311 = vmatprep.subr.mxu0 0.0
    %312 = vmatpush1.msra.mxu0 0.0
    %313 = vmatprep.subr.mxu0 0.0
    %314 = vmatpush1.msra.mxu0 0.0
    %315 = vmatprep.subr.mxu0 0.0
    %316 = vmatpush1.msra.mxu0 0.0
    %317 = vmatprep.subr.mxu0 0.0
    %318 = vmatpush1.msra.mxu0 0.0
    %319 = vmatprep.subr.mxu0 0.0
    %320 = vmatpush1.msra.mxu0 0.0
    %321 = vmatprep.subr.mxu0 0.0
    %322 = vmatpush1.msra.mxu0 0.0
    %323 = vmatprep.subr.mxu0 0.0
    %324 = vmatpush1.msra.mxu0 0.0
    %325 = vmatprep.subr.mxu0 0.0
    %326 = vmatpush1.msra.mxu0 0.0
    %327 = vmatprep.subr.mxu0 0.0
    %328 = vmatpush1.msra.mxu0 0.0
    %329 = vmatprep.subr.mxu0 0.0
    %330 = vmatpush1.msra.mxu0 0.0
    %331 = vmatprep.subr.mxu0 0.0
    %332 = vmatpush1.msra.mxu0 0.0
    %333 = vmatprep.subr.mxu0 0.0
    %334 = vmatpush1.msra.mxu0 0.0
    %335 = vmatprep.subr.mxu0 0.0
    %336 = vmatpush1.msra.mxu0 0.0
    %337 = vmatprep.subr.mxu0 0.0
    %338 = vmatpush1.msra.mxu0 0.0
    %339 = vmatprep.subr.mxu0 0.0
    %340 = vmatpush1.msra.mxu0 0.0
    %341 = vmatprep.subr.mxu0 0.0
    %342 = vmatpush1.msra.mxu0 0.0
    %343 = vmatprep.mubr.f32.mxu0 0.0
    %344 = vmatmul.mubr.f32.gmra.mrb[0].mxu0 %v135
    %v345 = vpop.f32.mrb[0].mxu0
    %v346 = vadd.f32 %v117, %v345
    %v347 = vpop.f32.mrb[0].mxu0
    %v348 = vadd.f32 %v121, %v347
    %349 = vdwg.mxu0
    %350 = vmatprep.subr.mxu0 0.0
    %351 = vmatpush1.msra.mxu0 %v46
    %352 = vmatprep.subr.mxu0 0.0
    %353 = vmatpush1.msra.mxu0 %v53
    %354 = vmatprep.subr.mxu0 0.0
    %355 = vmatpush1.msra.mxu0 %v60
    %356 = vmatprep.subr.mxu0 0.0
    %357 = vmatpush1.msra.mxu0 %v67
    %358 = vmatprep.subr.mxu0 0.0
    %359 = vmatpush1.msra.mxu0 %v74
    %360 = vmatprep.subr.mxu0 0.0
    %361 = vmatpush1.msra.mxu0 %v81
    %362 = vmatprep.subr.mxu0 0.0
    %363 = vmatpush1.msra.mxu0 %v88
    %364 = vmatprep.subr.mxu0 0.0
    %365 = vmatpush1.msra.mxu0 %v95
    %366 = vmatprep.subr.mxu0 0.0
    %367 = vmatpush1.msra.mxu0 0.0
    %368 = vmatprep.subr.mxu0 0.0
    %369 = vmatpush1.msra.mxu0 0.0
    %370 = vmatprep.subr.mxu0 0.0
    %371 = vmatpush1.msra.mxu0 0.0
    %372 = vmatprep.subr.mxu0 0.0
    %373 = vmatpush1.msra.mxu0 0.0
    %374 = vmatprep.subr.mxu0 0.0
    %375 = vmatpush1.msra.mxu0 0.0
    %376 = vmatprep.subr.mxu0 0.0
    %377 = vmatpush1.msra.mxu0 0.0
    %378 = vmatprep.subr.mxu0 0.0
    %379 = vmatpush1.msra.mxu0 0.0
    %380 = vmatprep.subr.mxu0 0.0
    %381 = vmatpush1.msra.mxu0 0.0
    %382 = vmatprep.subr.mxu0 0.0
    %383 = vmatpush1.msra.mxu0 0.0
    %384 = vmatprep.subr.mxu0 0.0
    %385 = vmatpush1.msra.mxu0 0.0
    %386 = vmatprep.subr.mxu0 0.0
    %387 = vmatpush1.msra.mxu0 0.0
    %388 = vmatprep.subr.mxu0 0.0
    %389 = vmatpush1.msra.mxu0 0.0
    %390 = vmatprep.subr.mxu0 0.0
    %391 = vmatpush1.msra.mxu0 0.0
    %392 = vmatprep.subr.mxu0 0.0
    %393 = vmatpush1.msra.mxu0 0.0
    %394 = vmatprep.subr.mxu0 0.0
    %395 = vmatpush1.msra.mxu0 0.0
    %396 = vmatprep.subr.mxu0 0.0
    %397 = vmatpush1.msra.mxu0 0.0
    %398 = vmatprep.subr.mxu0 0.0
    %399 = vmatpush1.msra.mxu0 0.0
    %400 = vmatprep.subr.mxu0 0.0
    %401 = vmatpush1.msra.mxu0 0.0
    %402 = vmatprep.subr.mxu0 0.0
    %403 = vmatpush1.msra.mxu0 0.0
    %404 = vmatprep.subr.mxu0 0.0
    %405 = vmatpush1.msra.mxu0 0.0
    %406 = vmatprep.subr.mxu0 0.0
    %407 = vmatpush1.msra.mxu0 0.0
    %408 = vmatprep.subr.mxu0 0.0
    %409 = vmatpush1.msra.mxu0 0.0
    %410 = vmatprep.subr.mxu0 0.0
    %411 = vmatpush1.msra.mxu0 0.0
    %412 = vmatprep.subr.mxu0 0.0
    %413 = vmatpush1.msra.mxu0 0.0
    %414 = vmatprep.mubr.f32.mxu0 0.0
    %415 = vmatmul.mubr.f32.gmra.mrb[0].mxu0 %v135
    %v416 = vpop.f32.mrb[0].mxu0
    %v417 = vadd.f32 %v125, %v416
    %v418 = vpop.f32.mrb[0].mxu0
    %419 = vdwg.mxu0
    %v420 = vand.u32 2147483647, %v204
    %422 = vset.pattern.permute.xlu0 0
    %423 = vperm.xlu0 %422, %v39
    %v424 = vpop.permute.xlu0 %423
    %v426 = vmul.f32 %v424, %v420
    %v427 = vadd.f32 %v346, %v426
    %v428 = vand.u32 2147483647, %v206
    %429 = vset.pattern.permute.xlu0 1
    %430 = vperm.xlu0 %429, %v39
    %v431 = vpop.permute.xlu0 %430
    %v433 = vmul.f32 %v431, %v428
    %v434 = vadd.f32 %v427, %v433
    %v435 = vand.u32 2147483647, %v275
    %436 = vset.pattern.permute.xlu0 2
    %437 = vperm.xlu0 %436, %v39
    %v438 = vpop.permute.xlu0 %437
    %v440 = vmul.f32 %v438, %v435
    %v441 = vadd.f32 %v434, %v440
    %v442 = vand.u32 2147483647, %v277
    %443 = vset.pattern.permute.xlu0 3
    %444 = vperm.xlu0 %443, %v39
    %v445 = vpop.permute.xlu0 %444
    %v447 = vmul.f32 %v445, %v442
    %v448 = vadd.f32 %v441, %v447
    %vm449 = vcmp.gt.f32.partialorder %v448, 0.0
    %v450 = vmin.f32 %v448, 0.0
    %v451 = vmul.f32 %v450, 1.442695
    %v452 = vpow.pop %v451
    %v453 = vsub.f32 %v452, 1.0
    %v454 = vsel %vm449, %v448, %v453
    %v455 = vand.u32 2147483647, %v348
    %v456 = vmax.f32 %v417, 0.0
    %v457 = vmul.f32 %v454, %v455
    %v458 = vld [vmem:[%s4] sm:$0x1]
    %v460 = vlaneseq
    %v461 = vshrl.u32 %v460, 7
    %v462 = vsub.s32 0, %v461
    %v463 = vrot.slane %v458, %v462
    %v465 = vmul.f32 %v456, %v463
    %v466 = vadd.f32 %v457, %v465
    %467 = vadd.xlane.f32.xlu0 %v466
    %v468 = vpop.xlane.xlu0 %467
    %s469 = sld [smem:[#allocation2]]
    %v470 = vstv %s469
    %v471 = vadd.f32 %v468, %v470
    %vm472 = vcmask 7168
    %473 = vst.msk [vmem:[%s6] sm:$0xff] %vm472, %v471
    // Predicated region
    $region30: #{tpu_custom_call.1} parent=1 // pred_check
      _
    $region31: #{tpu_custom_call.1} parent=1 // pred_check_branch
      %475 = sbr.rel (0) target = $region33
    $region32: #{tpu_custom_call.1} parent=1 // pred_region
      _
    $region33: #{tpu_custom_call.1} parent=1 // pred_fallthru
      _
    // Predicated region
    $region34: #{tpu_custom_call.1} parent=1 // pred_check
      _
    $region35: #{tpu_custom_call.1} parent=1 // pred_check_branch
      %477 = sbr.rel (0) target = $region37
    $region36: #{tpu_custom_call.1} parent=1 // pred_region
      _
    $region37: #{tpu_custom_call.1} parent=1 // pred_fallthru
      _
    %478 = vsyncpa [#allocation4], 1

</llo_original>
